<compile_context>
chip_gen: v7x
topology: tpu7x:2x2x1
jax: 0.10.0
libtpu: 0.0.40
codegen_flags: <defaults>
</compile_context>

<pallas_src>
import jax
import jax.numpy as jnp
from jax.experimental import pallas as pl
from jax.experimental.pallas import tpu as pltpu

K_IN = 28 * 28   # 784
N_OUT = 10       # logical output width
N_PAD = 128      # lane-dense weight width fed to the MXU


def linear_kernel(x_ref, w_ref, b_ref, o_ref):
    # x_ref: (TM, 784) f32   w_ref: (784, 128) bf16
    # b_ref: (1, 10) f32     o_ref: (TM, 10) f32
    x = x_ref[...].astype(jnp.bfloat16)                     # cast in-kernel (VPU, free vs DMA)
    acc = jnp.dot(x, w_ref[...], preferred_element_type=jnp.float32)
    o_ref[...] = acc[:, :N_OUT] + b_ref[...]                # narrow (masked) store; DMA-bound anyway


def _round_up(a, m):
    return (a + m - 1) // m * m


def prepare_params(w_t, b):
    """One-time weight/bias prep (hoisted out of the per-call forward path).

    w_t: (784, 10) f32, b: (10,) f32  ->  (784, 128) bf16 lane-dense, (1, 10) f32.
    """
    w_pad = jnp.zeros((K_IN, N_PAD), jnp.bfloat16).at[:, :N_OUT].set(
        w_t.astype(jnp.bfloat16))
    b_row = b.astype(jnp.float32).reshape(1, N_OUT)
    return w_pad, b_row


def simple_nn_forward(x, w_pad, b_row, *, tm=2048):
    """x: (B, 1, 28, 28) f32 -> (B, 10) f32 logits."""
    B = x.shape[0]

    # glue: view(-1, 784); keep f32 — bf16 cast happens inside the kernel
    x_flat = x.reshape(B, K_IN)

    # Batch tile: big enough to amortize per-step overhead, small enough that
    # the grid has >= 2 tiles (so v7x's two TensorCores both get work).
    # 8-row sublane granularity is correct for an f32 x block.
    TM = max(8, min(tm, _round_up(pl.cdiv(B, 2), 8)))
    grid = (pl.cdiv(B, TM),)  # ragged edge tile handled by Pallas

    cost = pl.CostEstimate(
        flops=2 * B * K_IN * N_PAD,            # MXU works on the 128-wide padded weight
        transcendentals=0,
        bytes_accessed=(B * K_IN * 4           # x (f32, read once)
                        + K_IN * N_PAD * 2     # w (bf16, VMEM-resident)
                        + N_OUT * 4            # bias
                        + B * N_OUT * 4),      # out (f32, 10-wide)
    )

    out = pl.pallas_call(
        linear_kernel,
        out_shape=jax.ShapeDtypeStruct((B, N_OUT), jnp.float32),
        grid_spec=pltpu.PrefetchScalarGridSpec(
            num_scalar_prefetch=0,
            grid=grid,
            in_specs=[
                pl.BlockSpec((TM, K_IN), lambda i: (i, 0)),      # x: tiled over batch
                pl.BlockSpec((K_IN, N_PAD), lambda i: (0, 0)),   # w: VMEM-resident
                pl.BlockSpec((1, N_OUT), lambda i: (0, 0)),      # b: VMEM-resident
            ],
            out_specs=pl.BlockSpec((TM, N_OUT), lambda i: (i, 0)),
        ),
        compiler_params=pltpu.CompilerParams(
            dimension_semantics=("parallel",),   # shard batch tiles across TCs (v7x)
            # NOTE: raise vmem_limit_bytes only if tm is pushed to >= 4096 on v7x.
        ),
        cost_estimate=cost,
    )(x_flat, w_pad, b_row)

    return out


if __name__ == "__main__":
    key = jax.random.PRNGKey(0)
    kx, kw, kb = jax.random.split(key, 3)

    B = 2
    x = jax.random.normal(kx, (B, 1, 28, 28), dtype=jnp.float32)

    # Deterministic parameter init (shapes from nn.Linear(784, 10)).
    # PyTorch stores weight as (10, 784); we keep the transposed (784, 10).
    bound = 1.0 / jnp.sqrt(784.0)
    w_t = jax.random.uniform(kw, (K_IN, N_OUT), jnp.float32, -bound, bound)
    b = jax.random.uniform(kb, (N_OUT,), jnp.float32, -bound, bound)

    # One-time parameter prep (model init), not per forward call.
    w_pad, b_row = prepare_params(w_t, b)

    out = simple_nn_forward(x, w_pad, b_row)
    jax.block_until_ready(out)

    # f32 reference; tolerance loosened because the MXU matmul runs in bf16.
    ref = x.reshape(B, -1) @ w_t + b
    assert out.shape == (B, N_OUT)
    assert jnp.allclose(out, ref, atol=3e-2, rtol=3e-2), (
        f"max abs err {jnp.max(jnp.abs(out - ref))}")

    print("KERNEL_OK")
</pallas_src>

<mosaic_0001>
module attributes {stable_mosaic.version = 11 : i64} {
  func.func @linear_kernel(%arg0: i32, %arg1: memref<8x784xf32, #tpu.memory_space<vmem>>, %arg2: memref<784x128xbf16, #tpu.memory_space<vmem>>, %arg3: memref<1x10xf32, #tpu.memory_space<vmem>>, %arg4: memref<8x10xf32, #tpu.memory_space<vmem>>) attributes {dimension_semantics = [#tpu.dimension_semantics<parallel>], iteration_bounds = array<i64: 1>, scalar_prefetch = 0 : i64, scratch_operands = 0 : i64, tpu.core_type = #tpu.core_type<tc>, window_params = [{transform_indices = @transform_0, window_bounds = array<i64: 8, 784>}, {pipeline_mode = #tpu.pipeline_mode<synchronous>, transform_indices = @transform_1, window_bounds = array<i64: 784, 128>}, {pipeline_mode = #tpu.pipeline_mode<synchronous>, transform_indices = @transform_2, window_bounds = array<i64: 1, 10>}, {transform_indices = @transform_3, window_bounds = array<i64: 8, 10>}]} {
    %c0 = arith.constant 0 : index
    %c0_0 = arith.constant 0 : index
    %0 = vector.load %arg1[%c0, %c0_0] : memref<8x784xf32, #tpu.memory_space<vmem>>, vector<8x784xf32>
    %1 = arith.truncf %0 : vector<8x784xf32> to vector<8x784xbf16>
    %c0_1 = arith.constant 0 : index
    %c0_2 = arith.constant 0 : index
    %2 = vector.load %arg2[%c0_1, %c0_2] : memref<784x128xbf16, #tpu.memory_space<vmem>>, vector<784x128xbf16>
    %cst = arith.constant dense<0.000000e+00> : vector<8x128xf32>
    %3 = tpu.matmul %1, %2, %cst {dimension_numbers = #tpu.dot_dimension_numbers<[1], [0], [0], [1], [0, 0, 1, 1], [], []>} : vector<8x784xbf16>, vector<784x128xbf16>, vector<8x128xf32> -> vector<8x128xf32>
    %4 = vector.extract_strided_slice %3 {offsets = [0, 0], sizes = [8, 10], strides = [1, 1]} : vector<8x128xf32> to vector<8x10xf32>
    %c0_3 = arith.constant 0 : index
    %c0_4 = arith.constant 0 : index
    %5 = vector.load %arg3[%c0_3, %c0_4] : memref<1x10xf32, #tpu.memory_space<vmem>>, vector<1x10xf32>
    %6 = vector.broadcast %5 : vector<1x10xf32> to vector<8x10xf32>
    %7 = arith.addf %4, %6 : vector<8x10xf32>
    %c0_5 = arith.constant 0 : index
    %c0_6 = arith.constant 0 : index
    %8 = vector.load %arg4[%c0_5, %c0_6] : memref<8x10xf32, #tpu.memory_space<vmem>>, vector<8x10xf32>
    tpu.vector_store %arg4[%c0_5, %c0_6], %7 {strides = array<i32>} : memref<8x10xf32, #tpu.memory_space<vmem>>, vector<8x10xf32>,
    return
  }
  func.func @transform_0(%arg0: i32) -> (i32, i32) {
    %c0_i32 = arith.constant 0 : i32
    %c0_i32_0 = arith.constant 0 : i32
    return %arg0, %c0_i32 : i32, i32
  }
  func.func @transform_1(%arg0: i32) -> (i32, i32) {
    %c0_i32 = arith.constant 0 : i32
    %c0_i32_0 = arith.constant 0 : i32
    %c0_i32_1 = arith.constant 0 : i32
    return %c0_i32, %c0_i32_0 : i32, i32
  }
  func.func @transform_2(%arg0: i32) -> (i32, i32) {
    %c0_i32 = arith.constant 0 : i32
    %c0_i32_0 = arith.constant 0 : i32
    %c0_i32_1 = arith.constant 0 : i32
    return %c0_i32, %c0_i32_0 : i32, i32
  }
  func.func @transform_3(%arg0: i32) -> (i32, i32) {
    %c0_i32 = arith.constant 0 : i32
    %c0_i32_0 = arith.constant 0 : i32
    return %arg0, %c0_i32 : i32, i32
  }
}

</mosaic_0001>

<llo_original>
// kernel: tpu_custom_call.1
$region0: #{tpu_custom_call.1}
  #allocation0 [shape = 'u32[]', space=smem, size = 0x4, offset = 0x4, fixed_abs, tag = 'smem constant byte address 0x4 - core index']
  #allocation1 [shape = 'u32[144,128]{1,0:T(1,128)}', space=vmem, size = 0x12000, scoped, tag = 'internal scratch']
  %s0 = inlined_call_operand.hbm [shape: f32[2,784], index: 0, kind: input, shape index: {}]
  %s1 = inlined_call_operand.hbm [shape: bf16[784,128], index: 1, kind: input, shape index: {}]
  %s2 = inlined_call_operand.vmem [shape: f32[1,10], index: 2, kind: input, shape index: {}]
  %s3 = inlined_call_operand.hbm [shape: f32[2,10], index: 3, kind: output, shape index: {}]
  %s4 = sld [smem:[#allocation0]]
  $region30: #{tpu_custom_call.1} parent=0
    _
  %s6 = ssub.s32 1, %s4
  %s7 = scalar_select 0, %s6, %s4
  $region1: #{tpu_custom_call.1} parent=0
    #allocation2 [shape = 'u8[28672]{0}', space=vmem, size = 0x7000, scoped, tag = 'input window, operand 0, single buffered']
    #allocation3 [shape = 's32[1]{0}', space=sflag, size = 0x4, scoped, tag = 'scoped memory for tpu_custom_call.1']
    #allocation4 [shape = 's32[1]{0}', space=sflag, size = 0x4, scoped, tag = 'scoped memory for tpu_custom_call.1']
    #allocation5 [shape = 'u8[200704]{0}', space=vmem, size = 0x31000, scoped, tag = 'input window, operand 1, single buffered']
    #allocation6 [shape = 's32[1]{0}', space=sflag, size = 0x4, scoped, tag = 'scoped memory for tpu_custom_call.1']
    #allocation7 [shape = 'u8[4096]{0}', space=vmem, size = 0x1000, scoped, tag = 'output window, operand 0, single buffered']
    %8 = vsyncpa [#allocation3], 0
    %9 = vsyncpa [#allocation6], 0
    %10 = vsyncpa [#allocation4], 0
    // Predicated region
    $region2: #{tpu_custom_call.1} parent=1 // pred_check
      _
    $region3: #{tpu_custom_call.1} parent=1 // pred_check_branch
      %12 = sbr.rel (0) target = $region5
    $region4: #{tpu_custom_call.1} parent=1 // pred_region
      %s14 = ssub.s32 896, 224
      %15 = vsyncadd [#allocation3], %s14
      %s16 = sshll.u32 [#allocation2], 4
      %s17 = int_to_ptr.vmem [resolvable:$true] %s16
      %22 = dma.hbm_to_vmem [thread:$0]  %s0, 224, %s17, [#allocation3], 224, 224, 14
    $region5: #{tpu_custom_call.1} parent=1 // pred_fallthru
      _
    // Predicated region
    $region6: #{tpu_custom_call.1} parent=1 // pred_check
      _
    $region7: #{tpu_custom_call.1} parent=1 // pred_check_branch
      %24 = sbr.rel (0) target = $region9
    $region8: #{tpu_custom_call.1} parent=1 // pred_region
      %s26 = ssub.s32 6272, 6272
      %27 = vsyncadd [#allocation6], %s26
      %s28 = sshll.u32 [#allocation5], 4
      %s29 = int_to_ptr.vmem [resolvable:$true] %s28
      %34 = dma.hbm_to_vmem [thread:$0]  %s1, 6272, %s29, [#allocation6], 64, 64, 4
    $region9: #{tpu_custom_call.1} parent=1 // pred_fallthru
      _
    // Predicated region
    $region10: #{tpu_custom_call.1} parent=1 // pred_check
      _
    $region11: #{tpu_custom_call.1} parent=1 // pred_check_branch
      %36 = sbr.rel (0) target = $region13
    $region12: #{tpu_custom_call.1} parent=1 // pred_region
      _
    $region13: #{tpu_custom_call.1} parent=1 // pred_fallthru
      _
    // Predicated region
    $region14: #{tpu_custom_call.1} parent=1 // pred_check
      _
    $region15: #{tpu_custom_call.1} parent=1 // pred_check_branch
      %38 = sbr.rel (0) target = $region17
    $region16: #{tpu_custom_call.1} parent=1 // pred_region
      %39 = dma.done [#allocation3], 896
    $region17: #{tpu_custom_call.1} parent=1 // pred_fallthru
      _
    // Predicated region
    $region18: #{tpu_custom_call.1} parent=1 // pred_check
      _
    $region19: #{tpu_custom_call.1} parent=1 // pred_check_branch
      %41 = sbr.rel (0) target = $region21
    $region20: #{tpu_custom_call.1} parent=1 // pred_region
      %42 = dma.done [#allocation6], 6272
    $region21: #{tpu_custom_call.1} parent=1 // pred_fallthru
      _
    %v44 = vld [vmem:[#allocation2] sm:$0xff]
    %v45 = vld [vmem:[#allocation2 + $0x8] sm:$0x3f]
    %v46 = vld [vmem:[#allocation2 + $0xe] sm:$0xff]
    %v47 = vld [vmem:[#allocation2 + $0x16] sm:$0x3f]
    %v48 = vld [vmem:[#allocation2 + $0x1c] sm:$0xff]
    %v49 = vld [vmem:[#allocation2 + $0x24] sm:$0x3f]
    %v50 = vld [vmem:[#allocation2 + $0x2a] sm:$0xff]
    %v51 = vld [vmem:[#allocation2 + $0x32] sm:$0x3f]
    %v60 = vcombine.low %v44, %v46
    %v61 = vcombine.high %v44, %v46
    %v62 = vcombine.low %v48, %v50
    %v63 = vcombine.high %v48, %v50
    %v65 = vunpack.c.l.s4 1983009808
    %v66 = vunpack.c.0.s8 %v65
    %v67 = vlaneseq
    %v68 = vshrl.u32 %v67, 7
    %v69 = vsub.s32 %v66, %v68
    %v70 = vrot.slane %v60, %v69
    %v72 = vunpack.c.l.s4 1983009808
    %v73 = vunpack.c.0.s8 %v72
    %v74 = vlaneseq
    %v75 = vshrl.u32 %v74, 7
    %v76 = vsub.s32 %v73, %v75
    %v77 = vrot.slane %v61, %v76
    %v79 = vunpack.c.l.s4 1983009808
    %v80 = vunpack.c.0.s8 %v79
    %v81 = vlaneseq
    %v82 = vshrl.u32 %v81, 7
    %v83 = vsub.s32 %v80, %v82
    %v84 = vrot.slane %v62, %v83
    %v86 = vunpack.c.l.s4 1983009808
    %v87 = vunpack.c.0.s8 %v86
    %v88 = vlaneseq
    %v89 = vshrl.u32 %v88, 7
    %v90 = vsub.s32 %v87, %v89
    %v91 = vrot.slane %v63, %v90
    %v92 = vcombine.low %v70, %v84
    %v93 = vcombine.high %v70, %v84
    %v94 = vcombine.low %v77, %v91
    %v95 = vcombine.high %v77, %v91
    %v96 = vcombine.low %v45, %v47
    %v97 = vcombine.high %v45, %v47
    %v98 = vcombine.low %v49, %v51
    %v99 = vcombine.high %v49, %v51
    %v101 = vunpack.c.l.s4 1983009808
    %v102 = vunpack.c.0.s8 %v101
    %v103 = vlaneseq
    %v104 = vshrl.u32 %v103, 7
    %v105 = vsub.s32 %v102, %v104
    %v106 = vrot.slane %v96, %v105
    %v108 = vunpack.c.l.s4 1983009808
    %v109 = vunpack.c.0.s8 %v108
    %v110 = vlaneseq
    %v111 = vshrl.u32 %v110, 7
    %v112 = vsub.s32 %v109, %v111
    %v113 = vrot.slane %v97, %v112
    %v115 = vunpack.c.l.s4 1983009808
    %v116 = vunpack.c.0.s8 %v115
    %v117 = vlaneseq
    %v118 = vshrl.u32 %v117, 7
    %v119 = vsub.s32 %v116, %v118
    %v120 = vrot.slane %v98, %v119
    %v122 = vunpack.c.l.s4 1983009808
    %v123 = vunpack.c.0.s8 %v122
    %v124 = vlaneseq
    %v125 = vshrl.u32 %v124, 7
    %v126 = vsub.s32 %v123, %v125
    %v127 = vrot.slane %v99, %v126
    %v128 = vcombine.low %v106, %v120
    %v129 = vcombine.high %v106, %v120
    %v130 = vcombine.low %v113, %v127
    %v138 = vpack.c.bf16 %v92, %v92
    %v139 = vpack.c.bf16 %v93, %v93
    %v140 = vpack.c.bf16 %v94, %v94
    %v141 = vpack.c.bf16 %v95, %v95
    %v142 = vpack.c.bf16 %v128, %v128
    %v143 = vpack.c.bf16 %v129, %v129
    %v144 = vpack.c.bf16 %v130, %v130
    %v145 = vld [vmem:[#allocation5] sm:$0xf]
    %v146 = vld [vmem:[#allocation5 + $0x4] sm:$0xf]
    %v147 = vld [vmem:[#allocation5 + $0x8] sm:$0xf]
    %v148 = vld [vmem:[#allocation5 + $0xc] sm:$0xf]
    %v149 = vld [vmem:[#allocation5 + $0x10] sm:$0xf]
    %v150 = vld [vmem:[#allocation5 + $0x14] sm:$0xf]
    %v151 = vld [vmem:[#allocation5 + $0x18] sm:$0xf]
    %v152 = vld [vmem:[#allocation5 + $0x1c] sm:$0xf]
    %v153 = vld [vmem:[#allocation5 + $0x20] sm:$0xf]
    %v154 = vld [vmem:[#allocation5 + $0x24] sm:$0xf]
    %v155 = vld [vmem:[#allocation5 + $0x28] sm:$0xf]
    %v156 = vld [vmem:[#allocation5 + $0x2c] sm:$0xf]
    %v157 = vld [vmem:[#allocation5 + $0x30] sm:$0xf]
    %v158 = vld [vmem:[#allocation5 + $0x34] sm:$0xf]
    %v159 = vld [vmem:[#allocation5 + $0x38] sm:$0xf]
    %v160 = vld [vmem:[#allocation5 + $0x3c] sm:$0xf]
    %v161 = vld [vmem:[#allocation5 + $0x40] sm:$0xf]
    %v162 = vld [vmem:[#allocation5 + $0x44] sm:$0xf]
    %v163 = vld [vmem:[#allocation5 + $0x48] sm:$0xf]
    %v164 = vld [vmem:[#allocation5 + $0x4c] sm:$0xf]
    %v165 = vld [vmem:[#allocation5 + $0x50] sm:$0xf]
    %v166 = vld [vmem:[#allocation5 + $0x54] sm:$0xf]
    %v167 = vld [vmem:[#allocation5 + $0x58] sm:$0xf]
    %v168 = vld [vmem:[#allocation5 + $0x5c] sm:$0xf]
    %v169 = vld [vmem:[#allocation5 + $0x60] sm:$0xf]
    %v170 = vld [vmem:[#allocation5 + $0x64] sm:$0xf]
    %v171 = vld [vmem:[#allocation5 + $0x68] sm:$0xf]
    %v172 = vld [vmem:[#allocation5 + $0x6c] sm:$0xf]
    %v173 = vld [vmem:[#allocation5 + $0x70] sm:$0xf]
    %v174 = vld [vmem:[#allocation5 + $0x74] sm:$0xf]
    %v175 = vld [vmem:[#allocation5 + $0x78] sm:$0xf]
    %v176 = vld [vmem:[#allocation5 + $0x7c] sm:$0xf]
    %v177 = vld [vmem:[#allocation5 + $0x80] sm:$0xf]
    %v178 = vld [vmem:[#allocation5 + $0x84] sm:$0xf]
    %v179 = vld [vmem:[#allocation5 + $0x88] sm:$0xf]
    %v180 = vld [vmem:[#allocation5 + $0x8c] sm:$0xf]
    %v181 = vld [vmem:[#allocation5 + $0x90] sm:$0xf]
    %v182 = vld [vmem:[#allocation5 + $0x94] sm:$0xf]
    %v183 = vld [vmem:[#allocation5 + $0x98] sm:$0xf]
    %v184 = vld [vmem:[#allocation5 + $0x9c] sm:$0xf]
    %v185 = vld [vmem:[#allocation5 + $0xa0] sm:$0xf]
    %v186 = vld [vmem:[#allocation5 + $0xa4] sm:$0xf]
    %v187 = vld [vmem:[#allocation5 + $0xa8] sm:$0xf]
    %v188 = vld [vmem:[#allocation5 + $0xac] sm:$0xf]
    %v189 = vld [vmem:[#allocation5 + $0xb0] sm:$0xf]
    %v190 = vld [vmem:[#allocation5 + $0xb4] sm:$0xf]
    %v191 = vld [vmem:[#allocation5 + $0xb8] sm:$0xf]
    %v192 = vld [vmem:[#allocation5 + $0xbc] sm:$0xf]
    %v193 = vld [vmem:[#allocation5 + $0xc0] sm:$0xf]
    %v194 = vld [vmem:[#allocation5 + $0xc4] sm:$0xf]
    %v195 = vld [vmem:[#allocation5 + $0xc8] sm:$0xf]
    %v196 = vld [vmem:[#allocation5 + $0xcc] sm:$0xf]
    %v197 = vld [vmem:[#allocation5 + $0xd0] sm:$0xf]
    %v198 = vld [vmem:[#allocation5 + $0xd4] sm:$0xf]
    %v199 = vld [vmem:[#allocation5 + $0xd8] sm:$0xf]
    %v200 = vld [vmem:[#allocation5 + $0xdc] sm:$0xf]
    %v201 = vld [vmem:[#allocation5 + $0xe0] sm:$0xf]
    %v202 = vld [vmem:[#allocation5 + $0xe4] sm:$0xf]
    %v203 = vld [vmem:[#allocation5 + $0xe8] sm:$0xf]
    %v204 = vld [vmem:[#allocation5 + $0xec] sm:$0xf]
    %v205 = vld [vmem:[#allocation5 + $0xf0] sm:$0xf]
    %v206 = vld [vmem:[#allocation5 + $0xf4] sm:$0xf]
    %v207 = vld [vmem:[#allocation5 + $0xf8] sm:$0xf]
    %v208 = vld [vmem:[#allocation5 + $0xfc] sm:$0xf]
    %v209 = vld [vmem:[#allocation5 + $0x100] sm:$0xf]
    %v210 = vld [vmem:[#allocation5 + $0x104] sm:$0xf]
    %v211 = vld [vmem:[#allocation5 + $0x108] sm:$0xf]
    %v212 = vld [vmem:[#allocation5 + $0x10c] sm:$0xf]
    %v213 = vld [vmem:[#allocation5 + $0x110] sm:$0xf]
    %v214 = vld [vmem:[#allocation5 + $0x114] sm:$0xf]
    %v215 = vld [vmem:[#allocation5 + $0x118] sm:$0xf]
    %v216 = vld [vmem:[#allocation5 + $0x11c] sm:$0xf]
    %v217 = vld [vmem:[#allocation5 + $0x120] sm:$0xf]
    %v218 = vld [vmem:[#allocation5 + $0x124] sm:$0xf]
    %v219 = vld [vmem:[#allocation5 + $0x128] sm:$0xf]
    %v220 = vld [vmem:[#allocation5 + $0x12c] sm:$0xf]
    %v221 = vld [vmem:[#allocation5 + $0x130] sm:$0xf]
    %v222 = vld [vmem:[#allocation5 + $0x134] sm:$0xf]
    %v223 = vld [vmem:[#allocation5 + $0x138] sm:$0xf]
    %v224 = vld [vmem:[#allocation5 + $0x13c] sm:$0xf]
    %v225 = vld [vmem:[#allocation5 + $0x140] sm:$0xf]
    %v226 = vld [vmem:[#allocation5 + $0x144] sm:$0xf]
    %v227 = vld [vmem:[#allocation5 + $0x148] sm:$0xf]
    %v228 = vld [vmem:[#allocation5 + $0x14c] sm:$0xf]
    %v229 = vld [vmem:[#allocation5 + $0x150] sm:$0xf]
    %v230 = vld [vmem:[#allocation5 + $0x154] sm:$0xf]
    %v231 = vld [vmem:[#allocation5 + $0x158] sm:$0xf]
    %v232 = vld [vmem:[#allocation5 + $0x15c] sm:$0xf]
    %v233 = vld [vmem:[#allocation5 + $0x160] sm:$0xf]
    %v234 = vld [vmem:[#allocation5 + $0x164] sm:$0xf]
    %v235 = vld [vmem:[#allocation5 + $0x168] sm:$0xf]
    %v236 = vld [vmem:[#allocation5 + $0x16c] sm:$0xf]
    %v237 = vld [vmem:[#allocation5 + $0x170] sm:$0xf]
    %v238 = vld [vmem:[#allocation5 + $0x174] sm:$0xf]
    %v239 = vld [vmem:[#allocation5 + $0x178] sm:$0xf]
    %v240 = vld [vmem:[#allocation5 + $0x17c] sm:$0xf]
    %v241 = vld [vmem:[#allocation5 + $0x180] sm:$0xf]
    %v242 = vld [vmem:[#allocation5 + $0x184] sm:$0xf]
    %v341 = vunpack.c.l.b16 %v145
    %v342 = vunpack.c.l.b16 %v146
    %v343 = vunpack.c.l.b16 %v147
    %v344 = vunpack.c.l.b16 %v148
    %v345 = vunpack.c.l.b16 %v149
    %v346 = vunpack.c.l.b16 %v150
    %v347 = vunpack.c.l.b16 %v151
    %v348 = vunpack.c.l.b16 %v152
    %v349 = vunpack.c.l.b16 %v153
    %v350 = vunpack.c.l.b16 %v154
    %v351 = vunpack.c.l.b16 %v155
    %v352 = vunpack.c.l.b16 %v156
    %v353 = vunpack.c.l.b16 %v157
    %v354 = vunpack.c.l.b16 %v158
    %v355 = vunpack.c.l.b16 %v159
    %v356 = vunpack.c.l.b16 %v160
    %v357 = vunpack.c.l.b16 %v161
    %v358 = vunpack.c.l.b16 %v162
    %v359 = vunpack.c.l.b16 %v163
    %v360 = vunpack.c.l.b16 %v164
    %v361 = vunpack.c.l.b16 %v165
    %v362 = vunpack.c.l.b16 %v166
    %v363 = vunpack.c.l.b16 %v167
    %v364 = vunpack.c.l.b16 %v168
    %v365 = vunpack.c.l.b16 %v169
    %v366 = vunpack.c.l.b16 %v170
    %v367 = vunpack.c.l.b16 %v171
    %v368 = vunpack.c.l.b16 %v172
    %v369 = vunpack.c.l.b16 %v173
    %v370 = vunpack.c.l.b16 %v174
    %v371 = vunpack.c.l.b16 %v175
    %v372 = vunpack.c.l.b16 %v176
    %v373 = vunpack.c.l.b16 %v177
    %v374 = vunpack.c.l.b16 %v178
    %v375 = vunpack.c.l.b16 %v179
    %v376 = vunpack.c.l.b16 %v180
    %v377 = vunpack.c.l.b16 %v181
    %v378 = vunpack.c.l.b16 %v182
    %v379 = vunpack.c.l.b16 %v183
    %v380 = vunpack.c.l.b16 %v184
    %v381 = vunpack.c.l.b16 %v185
    %v382 = vunpack.c.l.b16 %v186
    %v383 = vunpack.c.l.b16 %v187
    %v384 = vunpack.c.l.b16 %v188
    %v385 = vunpack.c.l.b16 %v189
    %v386 = vunpack.c.l.b16 %v190
    %v387 = vunpack.c.l.b16 %v191
    %v388 = vunpack.c.l.b16 %v192
    %v389 = vunpack.c.l.b16 %v193
    %v390 = vunpack.c.l.b16 %v194
    %v391 = vunpack.c.l.b16 %v195
    %v392 = vunpack.c.l.b16 %v196
    %v393 = vunpack.c.l.b16 %v197
    %v394 = vunpack.c.l.b16 %v198
    %v395 = vunpack.c.l.b16 %v199
    %v396 = vunpack.c.l.b16 %v200
    %v397 = vunpack.c.l.b16 %v201
    %v398 = vunpack.c.l.b16 %v202
    %v399 = vunpack.c.l.b16 %v203
    %v400 = vunpack.c.l.b16 %v204
    %v401 = vunpack.c.l.b16 %v205
    %v402 = vunpack.c.l.b16 %v206
    %v403 = vunpack.c.l.b16 %v207
    %v404 = vunpack.c.l.b16 %v208
    %v405 = vunpack.c.l.b16 %v209
    %v406 = vunpack.c.l.b16 %v210
    %v407 = vunpack.c.l.b16 %v211
    %v408 = vunpack.c.l.b16 %v212
    %v409 = vunpack.c.l.b16 %v213
    %v410 = vunpack.c.l.b16 %v214
    %v411 = vunpack.c.l.b16 %v215
    %v412 = vunpack.c.l.b16 %v216
    %v413 = vunpack.c.l.b16 %v217
    %v414 = vunpack.c.l.b16 %v218
    %v415 = vunpack.c.l.b16 %v219
    %v416 = vunpack.c.l.b16 %v220
    %v417 = vunpack.c.l.b16 %v221
    %v418 = vunpack.c.l.b16 %v222
    %v419 = vunpack.c.l.b16 %v223
    %v420 = vunpack.c.l.b16 %v224
    %v421 = vunpack.c.l.b16 %v225
    %v422 = vunpack.c.l.b16 %v226
    %v423 = vunpack.c.l.b16 %v227
    %v424 = vunpack.c.l.b16 %v228
    %v425 = vunpack.c.l.b16 %v229
    %v426 = vunpack.c.l.b16 %v230
    %v427 = vunpack.c.l.b16 %v231
    %v428 = vunpack.c.l.b16 %v232
    %v429 = vunpack.c.l.b16 %v233
    %v430 = vunpack.c.l.b16 %v234
    %v431 = vunpack.c.l.b16 %v235
    %v432 = vunpack.c.l.b16 %v236
    %v433 = vunpack.c.l.b16 %v237
    %v434 = vunpack.c.l.b16 %v238
    %v435 = vunpack.c.l.b16 %v239
    %v436 = vunpack.c.l.b16 %v240
    %v437 = vunpack.c.l.b16 %v241
    %v438 = vunpack.c.l.b16 %v242
    %v439 = vpack.c.b16 %v342, %v341
    %v440 = vpack.c.b16 %v344, %v343
    %v441 = vpack.c.b16 %v346, %v345
    %v442 = vpack.c.b16 %v348, %v347
    %v443 = vpack.c.b16 %v350, %v349
    %v444 = vpack.c.b16 %v352, %v351
    %v445 = vpack.c.b16 %v354, %v353
    %v446 = vpack.c.b16 %v356, %v355
    %v447 = vpack.c.b16 %v358, %v357
    %v448 = vpack.c.b16 %v360, %v359
    %v449 = vpack.c.b16 %v362, %v361
    %v450 = vpack.c.b16 %v364, %v363
    %v451 = vpack.c.b16 %v366, %v365
    %v452 = vpack.c.b16 %v368, %v367
    %v453 = vpack.c.b16 %v370, %v369
    %v454 = vpack.c.b16 %v372, %v371
    %v455 = vpack.c.b16 %v374, %v373
    %v456 = vpack.c.b16 %v376, %v375
    %v457 = vpack.c.b16 %v378, %v377
    %v458 = vpack.c.b16 %v380, %v379
    %v459 = vpack.c.b16 %v382, %v381
    %v460 = vpack.c.b16 %v384, %v383
    %v461 = vpack.c.b16 %v386, %v385
    %v462 = vpack.c.b16 %v388, %v387
    %v463 = vpack.c.b16 %v390, %v389
    %v464 = vpack.c.b16 %v392, %v391
    %v465 = vpack.c.b16 %v394, %v393
    %v466 = vpack.c.b16 %v396, %v395
    %v467 = vpack.c.b16 %v398, %v397
    %v468 = vpack.c.b16 %v400, %v399
    %v469 = vpack.c.b16 %v402, %v401
    %v470 = vpack.c.b16 %v404, %v403
    %v471 = vpack.c.b16 %v406, %v405
    %v472 = vpack.c.b16 %v408, %v407
    %v473 = vpack.c.b16 %v410, %v409
    %v474 = vpack.c.b16 %v412, %v411
    %v475 = vpack.c.b16 %v414, %v413
    %v476 = vpack.c.b16 %v416, %v415
    %v477 = vpack.c.b16 %v418, %v417
    %v478 = vpack.c.b16 %v420, %v419
    %v479 = vpack.c.b16 %v422, %v421
    %v480 = vpack.c.b16 %v424, %v423
    %v481 = vpack.c.b16 %v426, %v425
    %v482 = vpack.c.b16 %v428, %v427
    %v483 = vpack.c.b16 %v430, %v429
    %v484 = vpack.c.b16 %v432, %v431
    %v485 = vpack.c.b16 %v434, %v433
    %v486 = vpack.c.b16 %v436, %v435
    %v487 = vpack.c.b16 %v438, %v437
    %vm537 = vcmask 130048
    %v539 = vsel %vm537, %v144, 0
    %541 = vmatprep.subr.bf16.mxu0 0
    %542 = vmatpush1.bf16.msra.mxu0 %v439
    %543 = vmatprep.subr.bf16.mxu0 0
    %544 = vmatpush1.bf16.msra.mxu0 %v440
    %545 = vmatprep.subr.bf16.mxu0 0
    %546 = vmatpush1.bf16.msra.mxu0 %v441
    %547 = vmatprep.subr.bf16.mxu0 0
    %548 = vmatpush1.bf16.msra.mxu0 %v442
    %549 = vmatprep.subr.bf16.mxu0 0
    %550 = vmatpush1.bf16.msra.mxu0 %v443
    %551 = vmatprep.subr.bf16.mxu0 0
    %552 = vmatpush1.bf16.msra.mxu0 %v444
    %553 = vmatprep.subr.bf16.mxu0 0
    %554 = vmatpush1.bf16.msra.mxu0 %v445
    %555 = vmatprep.subr.bf16.mxu0 0
    %556 = vmatpush1.bf16.msra.mxu0 %v446
    %557 = vmatprep.subr.bf16.mxu0 0
    %558 = vmatpush1.bf16.msra.mxu0 %v447
    %559 = vmatprep.subr.bf16.mxu0 0
    %560 = vmatpush1.bf16.msra.mxu0 %v448
    %561 = vmatprep.subr.bf16.mxu0 0
    %562 = vmatpush1.bf16.msra.mxu0 %v449
    %563 = vmatprep.subr.bf16.mxu0 0
    %564 = vmatpush1.bf16.msra.mxu0 %v450
    %565 = vmatprep.subr.bf16.mxu0 0
    %566 = vmatpush1.bf16.msra.mxu0 %v451
    %567 = vmatprep.subr.bf16.mxu0 0
    %568 = vmatpush1.bf16.msra.mxu0 %v452
    %569 = vmatprep.subr.bf16.mxu0 0
    %570 = vmatpush1.bf16.msra.mxu0 %v453
    %571 = vmatprep.subr.bf16.mxu0 0
    %572 = vmatpush1.bf16.msra.mxu0 %v454
    %573 = vmatprep.mubr.bf16.mxu0 %v139
    %574 = vmatmul.mubr.bf16.gmra.mrb[0].mxu0 %v138
    %v575 = vpop.f32.mrb[0].mxu0
    %v576 = vadd.f32 0.0, %v575
    %v577 = vpop.f32.mrb[0].mxu0
    %v578 = vpop.f32.mrb[0].mxu0
    %v579 = vpop.f32.mrb[0].mxu0
    %580 = vdwg.mxu0
    %581 = vmatprep.subr.bf16.mxu0 0
    %582 = vmatpush1.bf16.msra.mxu0 %v455
    %583 = vmatprep.subr.bf16.mxu0 0
    %584 = vmatpush1.bf16.msra.mxu0 %v456
    %585 = vmatprep.subr.bf16.mxu0 0
    %586 = vmatpush1.bf16.msra.mxu0 %v457
    %587 = vmatprep.subr.bf16.mxu0 0
    %588 = vmatpush1.bf16.msra.mxu0 %v458
    %589 = vmatprep.subr.bf16.mxu0 0
    %590 = vmatpush1.bf16.msra.mxu0 %v459
    %591 = vmatprep.subr.bf16.mxu0 0
    %592 = vmatpush1.bf16.msra.mxu0 %v460
    %593 = vmatprep.subr.bf16.mxu0 0
    %594 = vmatpush1.bf16.msra.mxu0 %v461
    %595 = vmatprep.subr.bf16.mxu0 0
    %596 = vmatpush1.bf16.msra.mxu0 %v462
    %597 = vmatprep.subr.bf16.mxu0 0
    %598 = vmatpush1.bf16.msra.mxu0 %v463
    %599 = vmatprep.subr.bf16.mxu0 0
    %600 = vmatpush1.bf16.msra.mxu0 %v464
    %601 = vmatprep.subr.bf16.mxu0 0
    %602 = vmatpush1.bf16.msra.mxu0 %v465
    %603 = vmatprep.subr.bf16.mxu0 0
    %604 = vmatpush1.bf16.msra.mxu0 %v466
    %605 = vmatprep.subr.bf16.mxu0 0
    %606 = vmatpush1.bf16.msra.mxu0 %v467
    %607 = vmatprep.subr.bf16.mxu0 0
    %608 = vmatpush1.bf16.msra.mxu0 %v468
    %609 = vmatprep.subr.bf16.mxu0 0
    %610 = vmatpush1.bf16.msra.mxu0 %v469
    %611 = vmatprep.subr.bf16.mxu0 0
    %612 = vmatpush1.bf16.msra.mxu0 %v470
    %613 = vmatprep.mubr.bf16.mxu0 %v141
    %614 = vmatmul.mubr.bf16.gmra.mrb[0].mxu0 %v140
    %v615 = vpop.f32.mrb[0].mxu0
    %v616 = vadd.f32 %v576, %v615
    %v617 = vpop.f32.mrb[0].mxu0
    %v618 = vpop.f32.mrb[0].mxu0
    %v619 = vpop.f32.mrb[0].mxu0
    %620 = vdwg.mxu0
    %621 = vmatprep.subr.bf16.mxu0 0
    %622 = vmatpush1.bf16.msra.mxu0 %v471
    %623 = vmatprep.subr.bf16.mxu0 0
    %624 = vmatpush1.bf16.msra.mxu0 %v472
    %625 = vmatprep.subr.bf16.mxu0 0
    %626 = vmatpush1.bf16.msra.mxu0 %v473
    %627 = vmatprep.subr.bf16.mxu0 0
    %628 = vmatpush1.bf16.msra.mxu0 %v474
    %629 = vmatprep.subr.bf16.mxu0 0
    %630 = vmatpush1.bf16.msra.mxu0 %v475
    %631 = vmatprep.subr.bf16.mxu0 0
    %632 = vmatpush1.bf16.msra.mxu0 %v476
    %633 = vmatprep.subr.bf16.mxu0 0
    %634 = vmatpush1.bf16.msra.mxu0 %v477
    %635 = vmatprep.subr.bf16.mxu0 0
    %636 = vmatpush1.bf16.msra.mxu0 %v478
    %637 = vmatprep.subr.bf16.mxu0 0
    %638 = vmatpush1.bf16.msra.mxu0 %v479
    %639 = vmatprep.subr.bf16.mxu0 0
    %640 = vmatpush1.bf16.msra.mxu0 %v480
    %641 = vmatprep.subr.bf16.mxu0 0
    %642 = vmatpush1.bf16.msra.mxu0 %v481
    %643 = vmatprep.subr.bf16.mxu0 0
    %644 = vmatpush1.bf16.msra.mxu0 %v482
    %645 = vmatprep.subr.bf16.mxu0 0
    %646 = vmatpush1.bf16.msra.mxu0 %v483
    %647 = vmatprep.subr.bf16.mxu0 0
    %648 = vmatpush1.bf16.msra.mxu0 %v484
    %649 = vmatprep.subr.bf16.mxu0 0
    %650 = vmatpush1.bf16.msra.mxu0 %v485
    %651 = vmatprep.subr.bf16.mxu0 0
    %652 = vmatpush1.bf16.msra.mxu0 %v486
    %653 = vmatprep.mubr.bf16.mxu0 %v143
    %654 = vmatmul.mubr.bf16.gmra.mrb[0].mxu0 %v142
    %v655 = vpop.f32.mrb[0].mxu0
    %v656 = vadd.f32 %v616, %v655
    %v657 = vpop.f32.mrb[0].mxu0
    %v658 = vpop.f32.mrb[0].mxu0
    %v659 = vpop.f32.mrb[0].mxu0
    %660 = vdwg.mxu0
    %661 = vmatprep.subr.bf16.mxu0 0
    %662 = vmatpush1.bf16.msra.mxu0 %v487
    %663 = vmatprep.subr.bf16.mxu0 0
    %664 = vmatpush1.bf16.msra.mxu0 0
    %665 = vmatprep.subr.bf16.mxu0 0
    %666 = vmatpush1.bf16.msra.mxu0 0
    %667 = vmatprep.subr.bf16.mxu0 0
    %668 = vmatpush1.bf16.msra.mxu0 0
    %669 = vmatprep.subr.bf16.mxu0 0
    %670 = vmatpush1.bf16.msra.mxu0 0
    %671 = vmatprep.subr.bf16.mxu0 0
    %672 = vmatpush1.bf16.msra.mxu0 0
    %673 = vmatprep.subr.bf16.mxu0 0
    %674 = vmatpush1.bf16.msra.mxu0 0
    %675 = vmatprep.subr.bf16.mxu0 0
    %676 = vmatpush1.bf16.msra.mxu0 0
    %677 = vmatprep.subr.bf16.mxu0 0
    %678 = vmatpush1.bf16.msra.mxu0 0
    %679 = vmatprep.subr.bf16.mxu0 0
    %680 = vmatpush1.bf16.msra.mxu0 0
    %681 = vmatprep.subr.bf16.mxu0 0
    %682 = vmatpush1.bf16.msra.mxu0 0
    %683 = vmatprep.subr.bf16.mxu0 0
    %684 = vmatpush1.bf16.msra.mxu0 0
    %685 = vmatprep.subr.bf16.mxu0 0
    %686 = vmatpush1.bf16.msra.mxu0 0
    %687 = vmatprep.subr.bf16.mxu0 0
    %688 = vmatpush1.bf16.msra.mxu0 0
    %689 = vmatprep.subr.bf16.mxu0 0
    %690 = vmatpush1.bf16.msra.mxu0 0
    %691 = vmatprep.subr.bf16.mxu0 0
    %692 = vmatpush1.bf16.msra.mxu0 0
    %693 = vmatprep.mubr.bf16.mxu0 0
    %694 = vmatmul.mubr.bf16.gmra.mrb[0].mxu0 %v539
    %v695 = vpop.f32.mrb[0].mxu0
    %v696 = vadd.f32 %v656, %v695
    %v697 = vpop.f32.mrb[0].mxu0
    %v698 = vpop.f32.mrb[0].mxu0
    %v699 = vpop.f32.mrb[0].mxu0
    %700 = vdwg.mxu0
    %v701 = vld [vmem:[%s2] sm:$0x1]
    %v703 = vlaneseq
    %v704 = vshrl.u32 %v703, 7
    %v705 = vsub.s32 0, %v704
    %v706 = vrot.slane %v701, %v705
    %v708 = vadd.f32 %v696, %v706
    %vm709 = vcmask 80896
    %710 = vst.msk [vmem:[#allocation7] sm:$0xff] %vm709, %v708
    // Predicated region
    $region22: #{tpu_custom_call.1} parent=1 // pred_check
      _
    $region23: #{tpu_custom_call.1} parent=1 // pred_check_branch
      %712 = sbr.rel (0) target = $region25
    $region24: #{tpu_custom_call.1} parent=1 // pred_region
      %s714 = ssub.s32 128, 32
      %715 = vsyncadd [#allocation4], %s714
      %s716 = sshll.u32 [#allocation7], 4
      %s717 = int_to_ptr.vmem [resolvable:$true] %s716
      %722 = dma.vmem_to_hbm [thread:$0]  %s717, 32, %s3, [#allocation4], 32, 32, 2
    $region25: #{tpu_custom_call.1} parent=1 // pred_fallthru
      _
    // Predicated region
    $region26: #{tpu_custom_call.1} parent=1 // pred_check
      _
    $region27: #{tpu_custom_call.1} parent=1 // pred_check_branch
      %724 = sbr.rel (0) target = $region29
    $region28: #{tpu_custom_call.1} parent=1 // pred_region
      %725 = dma.done [#allocation4], 128
    $region29: #{tpu_custom_call.1} parent=1 // pred_fallthru
      _
    %726 = vsyncpa [#allocation3], 1
    %727 = vsyncpa [#allocation6], 1
    %728 = vsyncpa [#allocation4], 1

</llo_original>
